<compile_context>
chip_gen: v6e
topology: v6e:2x2x1
jax: 0.10.0
libtpu: 0.0.40
codegen_flags: <defaults>
</compile_context>

<pallas_src>
import math

import jax
import jax.numpy as jnp
from jax.experimental import pallas as pl
from jax.experimental.pallas import tpu as pltpu


def _convt_polyphase_kernel(x_ref, w_ref, o_ref):
    """One batch element of the k=3, s=2, p=1, op=1 transposed conv, polyphase form.

    x_ref: (1, 4, Cin, L)    shifted input views x[i+dy, j+dx], spatial flattened (L = H*W)
    w_ref: (3, 3, Cout, Cin) per-tap matrices, pre-transposed to (Cout, Cin)
    o_ref: (1, 4, Cout, L)   output phases, (row,col) parity order: EE, EO, OE, OO
    """
    x00 = x_ref[0, 0]          # x[i,   j  ]
    x01 = x_ref[0, 1]          # x[i,   j+1]   (0 past the right edge)
    x10 = x_ref[0, 2]          # x[i+1, j  ]   (0 past the bottom edge)
    x11 = x_ref[0, 3]          # x[i+1, j+1]

    def mm(a, b):              # (Cout, Cin) x (Cin, L) -> (Cout, L), MXU, f32 accumulate
        return jnp.dot(a, b, preferred_element_type=jnp.float32)

    # y[2i  , 2j  ] = w11 x[i,j]
    # y[2i  , 2j+1] = w12 x[i,j] + w10 x[i,j+1]
    # y[2i+1, 2j  ] = w21 x[i,j] + w01 x[i+1,j]
    # y[2i+1, 2j+1] = w22 x[i,j] + w20 x[i,j+1] + w02 x[i+1,j] + w00 x[i+1,j+1]
    y_ee = mm(w_ref[1, 1], x00)
    y_eo = mm(w_ref[1, 2], x00) + mm(w_ref[1, 0], x01)
    y_oe = mm(w_ref[2, 1], x00) + mm(w_ref[0, 1], x10)
    y_oo = (mm(w_ref[2, 2], x00) + mm(w_ref[2, 0], x01)
            + mm(w_ref[0, 2], x10) + mm(w_ref[0, 0], x11))

    o_ref[0, 0] = y_ee.astype(o_ref.dtype)
    o_ref[0, 1] = y_eo.astype(o_ref.dtype)
    o_ref[0, 2] = y_oe.astype(o_ref.dtype)
    o_ref[0, 3] = y_oo.astype(o_ref.dtype)


def conv_transpose2d_pallas(x_nchw, weight_t):
    """Equivalent of nn.ConvTranspose2d(Cin, Cout, 3, 2, 1, output_padding=1, bias=False).

    x_nchw:   (N, Cin, H, W)      float32, NCHW (kept NCHW end-to-end)
    weight_t: (Cin, Cout, 3, 3)   PyTorch ConvTranspose2d weight layout
    returns:  (N, Cout, 2H, 2W)
    """
    N, Cin, H, W = x_nchw.shape
    Cin_w, Cout, K, K2 = weight_t.shape
    assert Cin == Cin_w and K == 3 and K2 == 3
    Ho, Wo, L = 2 * H, 2 * W, H * W

    # Four shifted views x[i+dy, j+dx] (zero outside), spatially flattened.
    # These replace the old zero-dilated + padded intermediate; the trailing reshape
    # is a free row-major merge.
    xp = jnp.pad(x_nchw, ((0, 0), (0, 0), (0, 1), (0, 1)))
    xviews = jnp.stack(
        [xp[:, :, dy:dy + H, dx:dx + W] for dy, dx in ((0, 0), (0, 1), (1, 0), (1, 1))],
        axis=1,
    ).reshape(N, 4, Cin, L)

    # Per-tap matrices, pre-transposed: w4[ky, kx, co, ci] = weight_t[ci, co, ky, kx].
    w4 = jnp.transpose(weight_t, (2, 3, 1, 0))

    phases = pl.pallas_call(
        _convt_polyphase_kernel,
        out_shape=jax.ShapeDtypeStruct((N, 4, Cout, L), x_nchw.dtype),
        grid_spec=pltpu.PrefetchScalarGridSpec(
            num_scalar_prefetch=0,
            grid=(N,),
            in_specs=[
                pl.BlockSpec((1, 4, Cin, L), lambda n: (n, 0, 0, 0)),
                pl.BlockSpec((3, 3, Cout, Cin), lambda n: (0, 0, 0, 0)),
            ],
            out_specs=pl.BlockSpec((1, 4, Cout, L), lambda n: (n, 0, 0, 0)),
        ),
        compiler_params=pltpu.CompilerParams(dimension_semantics=("parallel",)),
    )(xviews, w4)

    # Interleave the four phases into NCHW output: reshape (free) + one fused XLA
    # transpose (single HBM pass over the output).
    o6 = phases.reshape(N, 2, 2, Cout, H, W)               # (n, rp, cp, co, i, j)
    out = jnp.transpose(o6, (0, 3, 4, 1, 5, 2))            # (n, co, i, rp, j, cp)
    return out.reshape(N, Cout, Ho, Wo)


def xavier_uniform_convtranspose_weight(key, in_channels, out_channels, k):
    # PyTorch ConvTranspose2d weight shape: (in, out, k, k)
    # xavier_uniform_: fan_in = shape[1]*k*k, fan_out = shape[0]*k*k, gain = 1
    fan_in = out_channels * k * k
    fan_out = in_channels * k * k
    bound = math.sqrt(6.0 / (fan_in + fan_out))
    return jax.random.uniform(key, (in_channels, out_channels, k, k),
                              jnp.float32, minval=-bound, maxval=bound)


if __name__ == "__main__":
    key = jax.random.PRNGKey(0)
    kx, kw = jax.random.split(key)

    N, Cin, Cout, H, W, K = 2, 4, 4, 16, 16, 3
    x = jax.random.normal(kx, (N, Cin, H, W), jnp.float32)
    weight_t = xavier_uniform_convtranspose_weight(kw, Cin, Cout, K)

    convt = jax.jit(conv_transpose2d_pallas)
    out = convt(x, weight_t)
    out = jax.block_until_ready(out)
    assert out.shape == (N, Cout, 2 * H, 2 * W), out.shape

    # independent reference via XLA's dilated conv (same math, no Pallas involved)
    w_oihw = jnp.transpose(weight_t[:, :, ::-1, ::-1], (1, 0, 2, 3))
    ref = jax.lax.conv_general_dilated(
        x, w_oihw, window_strides=(1, 1),
        padding=((K - 2, K - 1), (K - 2, K - 1)),   # ((1,2),(1,2))
        lhs_dilation=(2, 2),
        dimension_numbers=("NCHW", "OIHW", "NCHW"))
    assert jnp.allclose(out, ref, atol=1e-4, rtol=1e-4), float(jnp.max(jnp.abs(out - ref)))

    print("KERNEL_OK")
</pallas_src>

<mosaic_0001>
module attributes {stable_mosaic.version = 11 : i64} {
  func.func @_convt_polyphase_kernel(%arg0: i32, %arg1: memref<1x4x4x256xf32, #tpu.memory_space<vmem>>, %arg2: memref<3x3x4x4xf32, #tpu.memory_space<vmem>>, %arg3: memref<1x4x4x256xf32, #tpu.memory_space<vmem>>) attributes {dimension_semantics = [#tpu.dimension_semantics<parallel>], iteration_bounds = array<i64: 2>, scalar_prefetch = 0 : i64, scratch_operands = 0 : i64, tpu.core_type = #tpu.core_type<tc>, window_params = [{transform_indices = @transform_0, window_bounds = array<i64: 1, 4, 4, 256>}, {pipeline_mode = #tpu.pipeline_mode<synchronous>, transform_indices = @transform_1, window_bounds = array<i64: 3, 3, 4, 4>}, {transform_indices = @transform_2, window_bounds = array<i64: 1, 4, 4, 256>}]} {
    %c0 = arith.constant 0 : index
    %c0_0 = arith.constant 0 : index
    %c0_1 = arith.constant 0 : index
    %c0_2 = arith.constant 0 : index
    %0 = vector.load %arg1[%c0, %c0_0, %c0_1, %c0_2] : memref<1x4x4x256xf32, #tpu.memory_space<vmem>>, vector<1x1x4x256xf32>
    %1 = vector.shape_cast %0 : vector<1x1x4x256xf32> to vector<4x256xf32>
    %c0_3 = arith.constant 0 : index
    %c1 = arith.constant 1 : index
    %c0_4 = arith.constant 0 : index
    %c0_5 = arith.constant 0 : index
    %2 = vector.load %arg1[%c0_3, %c1, %c0_4, %c0_5] : memref<1x4x4x256xf32, #tpu.memory_space<vmem>>, vector<1x1x4x256xf32>
    %3 = vector.shape_cast %2 : vector<1x1x4x256xf32> to vector<4x256xf32>
    %c0_6 = arith.constant 0 : index
    %c2 = arith.constant 2 : index
    %c0_7 = arith.constant 0 : index
    %c0_8 = arith.constant 0 : index
    %4 = vector.load %arg1[%c0_6, %c2, %c0_7, %c0_8] : memref<1x4x4x256xf32, #tpu.memory_space<vmem>>, vector<1x1x4x256xf32>
    %5 = vector.shape_cast %4 : vector<1x1x4x256xf32> to vector<4x256xf32>
    %c0_9 = arith.constant 0 : index
    %c3 = arith.constant 3 : index
    %c0_10 = arith.constant 0 : index
    %c0_11 = arith.constant 0 : index
    %6 = vector.load %arg1[%c0_9, %c3, %c0_10, %c0_11] : memref<1x4x4x256xf32, #tpu.memory_space<vmem>>, vector<1x1x4x256xf32>
    %7 = vector.shape_cast %6 : vector<1x1x4x256xf32> to vector<4x256xf32>
    %c1_12 = arith.constant 1 : index
    %c1_13 = arith.constant 1 : index
    %c0_14 = arith.constant 0 : index
    %c0_15 = arith.constant 0 : index
    %8 = vector.load %arg2[%c1_12, %c1_13, %c0_14, %c0_15] : memref<3x3x4x4xf32, #tpu.memory_space<vmem>>, vector<1x1x4x4xf32>
    %9 = vector.shape_cast %8 : vector<1x1x4x4xf32> to vector<4x4xf32>
    %cst = arith.constant dense<0.000000e+00> : vector<4x256xf32>
    %10 = tpu.matmul %9, %1, %cst {dimension_numbers = #tpu.dot_dimension_numbers<[1], [0], [0], [1], [0, 0, 1, 1], [], []>} : vector<4x4xf32>, vector<4x256xf32>, vector<4x256xf32> -> vector<4x256xf32>
    %c1_16 = arith.constant 1 : index
    %c2_17 = arith.constant 2 : index
    %c0_18 = arith.constant 0 : index
    %c0_19 = arith.constant 0 : index
    %11 = vector.load %arg2[%c1_16, %c2_17, %c0_18, %c0_19] : memref<3x3x4x4xf32, #tpu.memory_space<vmem>>, vector<1x1x4x4xf32>
    %12 = vector.shape_cast %11 : vector<1x1x4x4xf32> to vector<4x4xf32>
    %cst_20 = arith.constant dense<0.000000e+00> : vector<4x256xf32>
    %13 = tpu.matmul %12, %1, %cst_20 {dimension_numbers = #tpu.dot_dimension_numbers<[1], [0], [0], [1], [0, 0, 1, 1], [], []>} : vector<4x4xf32>, vector<4x256xf32>, vector<4x256xf32> -> vector<4x256xf32>
    %c1_21 = arith.constant 1 : index
    %c0_22 = arith.constant 0 : index
    %c0_23 = arith.constant 0 : index
    %c0_24 = arith.constant 0 : index
    %14 = vector.load %arg2[%c1_21, %c0_22, %c0_23, %c0_24] : memref<3x3x4x4xf32, #tpu.memory_space<vmem>>, vector<1x1x4x4xf32>
    %15 = vector.shape_cast %14 : vector<1x1x4x4xf32> to vector<4x4xf32>
    %cst_25 = arith.constant dense<0.000000e+00> : vector<4x256xf32>
    %16 = tpu.matmul %15, %3, %cst_25 {dimension_numbers = #tpu.dot_dimension_numbers<[1], [0], [0], [1], [0, 0, 1, 1], [], []>} : vector<4x4xf32>, vector<4x256xf32>, vector<4x256xf32> -> vector<4x256xf32>
    %17 = arith.addf %13, %16 : vector<4x256xf32>
    %c2_26 = arith.constant 2 : index
    %c1_27 = arith.constant 1 : index
    %c0_28 = arith.constant 0 : index
    %c0_29 = arith.constant 0 : index
    %18 = vector.load %arg2[%c2_26, %c1_27, %c0_28, %c0_29] : memref<3x3x4x4xf32, #tpu.memory_space<vmem>>, vector<1x1x4x4xf32>
    %19 = vector.shape_cast %18 : vector<1x1x4x4xf32> to vector<4x4xf32>
    %cst_30 = arith.constant dense<0.000000e+00> : vector<4x256xf32>
    %20 = tpu.matmul %19, %1, %cst_30 {dimension_numbers = #tpu.dot_dimension_numbers<[1], [0], [0], [1], [0, 0, 1, 1], [], []>} : vector<4x4xf32>, vector<4x256xf32>, vector<4x256xf32> -> vector<4x256xf32>
    %c0_31 = arith.constant 0 : index
    %c1_32 = arith.constant 1 : index
    %c0_33 = arith.constant 0 : index
    %c0_34 = arith.constant 0 : index
    %21 = vector.load %arg2[%c0_31, %c1_32, %c0_33, %c0_34] : memref<3x3x4x4xf32, #tpu.memory_space<vmem>>, vector<1x1x4x4xf32>
    %22 = vector.shape_cast %21 : vector<1x1x4x4xf32> to vector<4x4xf32>
    %cst_35 = arith.constant dense<0.000000e+00> : vector<4x256xf32>
    %23 = tpu.matmul %22, %5, %cst_35 {dimension_numbers = #tpu.dot_dimension_numbers<[1], [0], [0], [1], [0, 0, 1, 1], [], []>} : vector<4x4xf32>, vector<4x256xf32>, vector<4x256xf32> -> vector<4x256xf32>
    %24 = arith.addf %20, %23 : vector<4x256xf32>
    %c2_36 = arith.constant 2 : index
    %c2_37 = arith.constant 2 : index
    %c0_38 = arith.constant 0 : index
    %c0_39 = arith.constant 0 : index
    %25 = vector.load %arg2[%c2_36, %c2_37, %c0_38, %c0_39] : memref<3x3x4x4xf32, #tpu.memory_space<vmem>>, vector<1x1x4x4xf32>
    %26 = vector.shape_cast %25 : vector<1x1x4x4xf32> to vector<4x4xf32>
    %cst_40 = arith.constant dense<0.000000e+00> : vector<4x256xf32>
    %27 = tpu.matmul %26, %1, %cst_40 {dimension_numbers = #tpu.dot_dimension_numbers<[1], [0], [0], [1], [0, 0, 1, 1], [], []>} : vector<4x4xf32>, vector<4x256xf32>, vector<4x256xf32> -> vector<4x256xf32>
    %c2_41 = arith.constant 2 : index
    %c0_42 = arith.constant 0 : index
    %c0_43 = arith.constant 0 : index
    %c0_44 = arith.constant 0 : index
    %28 = vector.load %arg2[%c2_41, %c0_42, %c0_43, %c0_44] : memref<3x3x4x4xf32, #tpu.memory_space<vmem>>, vector<1x1x4x4xf32>
    %29 = vector.shape_cast %28 : vector<1x1x4x4xf32> to vector<4x4xf32>
    %cst_45 = arith.constant dense<0.000000e+00> : vector<4x256xf32>
    %30 = tpu.matmul %29, %3, %cst_45 {dimension_numbers = #tpu.dot_dimension_numbers<[1], [0], [0], [1], [0, 0, 1, 1], [], []>} : vector<4x4xf32>, vector<4x256xf32>, vector<4x256xf32> -> vector<4x256xf32>
    %31 = arith.addf %27, %30 : vector<4x256xf32>
    %c0_46 = arith.constant 0 : index
    %c2_47 = arith.constant 2 : index
    %c0_48 = arith.constant 0 : index
    %c0_49 = arith.constant 0 : index
    %32 = vector.load %arg2[%c0_46, %c2_47, %c0_48, %c0_49] : memref<3x3x4x4xf32, #tpu.memory_space<vmem>>, vector<1x1x4x4xf32>
    %33 = vector.shape_cast %32 : vector<1x1x4x4xf32> to vector<4x4xf32>
    %cst_50 = arith.constant dense<0.000000e+00> : vector<4x256xf32>
    %34 = tpu.matmul %33, %5, %cst_50 {dimension_numbers = #tpu.dot_dimension_numbers<[1], [0], [0], [1], [0, 0, 1, 1], [], []>} : vector<4x4xf32>, vector<4x256xf32>, vector<4x256xf32> -> vector<4x256xf32>
    %35 = arith.addf %31, %34 : vector<4x256xf32>
    %c0_51 = arith.constant 0 : index
    %c0_52 = arith.constant 0 : index
    %c0_53 = arith.constant 0 : index
    %c0_54 = arith.constant 0 : index
    %36 = vector.load %arg2[%c0_51, %c0_52, %c0_53, %c0_54] : memref<3x3x4x4xf32, #tpu.memory_space<vmem>>, vector<1x1x4x4xf32>
    %37 = vector.shape_cast %36 : vector<1x1x4x4xf32> to vector<4x4xf32>
    %cst_55 = arith.constant dense<0.000000e+00> : vector<4x256xf32>
    %38 = tpu.matmul %37, %7, %cst_55 {dimension_numbers = #tpu.dot_dimension_numbers<[1], [0], [0], [1], [0, 0, 1, 1], [], []>} : vector<4x4xf32>, vector<4x256xf32>, vector<4x256xf32> -> vector<4x256xf32>
    %39 = arith.addf %35, %38 : vector<4x256xf32>
    %c0_56 = arith.constant 0 : index
    %c0_57 = arith.constant 0 : index
    %c0_58 = arith.constant 0 : index
    %c0_59 = arith.constant 0 : index
    %40 = vector.load %arg3[%c0_56, %c0_57, %c0_58, %c0_59] : memref<1x4x4x256xf32, #tpu.memory_space<vmem>>, vector<1x1x4x256xf32>
    %41 = vector.shape_cast %40 : vector<1x1x4x256xf32> to vector<4x256xf32>
    %42 = vector.shape_cast %10 : vector<4x256xf32> to vector<1x1x4x256xf32>
    tpu.vector_store %arg3[%c0_56, %c0_57, %c0_58, %c0_59], %42 {strides = array<i32>} : memref<1x4x4x256xf32, #tpu.memory_space<vmem>>, vector<1x1x4x256xf32>,
    %c0_60 = arith.constant 0 : index
    %c1_61 = arith.constant 1 : index
    %c0_62 = arith.constant 0 : index
    %c0_63 = arith.constant 0 : index
    %43 = vector.load %arg3[%c0_60, %c1_61, %c0_62, %c0_63] : memref<1x4x4x256xf32, #tpu.memory_space<vmem>>, vector<1x1x4x256xf32>
    %44 = vector.shape_cast %43 : vector<1x1x4x256xf32> to vector<4x256xf32>
    %45 = vector.shape_cast %17 : vector<4x256xf32> to vector<1x1x4x256xf32>
    tpu.vector_store %arg3[%c0_60, %c1_61, %c0_62, %c0_63], %45 {strides = array<i32>} : memref<1x4x4x256xf32, #tpu.memory_space<vmem>>, vector<1x1x4x256xf32>,
    %c0_64 = arith.constant 0 : index
    %c2_65 = arith.constant 2 : index
    %c0_66 = arith.constant 0 : index
    %c0_67 = arith.constant 0 : index
    %46 = vector.load %arg3[%c0_64, %c2_65, %c0_66, %c0_67] : memref<1x4x4x256xf32, #tpu.memory_space<vmem>>, vector<1x1x4x256xf32>
    %47 = vector.shape_cast %46 : vector<1x1x4x256xf32> to vector<4x256xf32>
    %48 = vector.shape_cast %24 : vector<4x256xf32> to vector<1x1x4x256xf32>
    tpu.vector_store %arg3[%c0_64, %c2_65, %c0_66, %c0_67], %48 {strides = array<i32>} : memref<1x4x4x256xf32, #tpu.memory_space<vmem>>, vector<1x1x4x256xf32>,
    %c0_68 = arith.constant 0 : index
    %c3_69 = arith.constant 3 : index
    %c0_70 = arith.constant 0 : index
    %c0_71 = arith.constant 0 : index
    %49 = vector.load %arg3[%c0_68, %c3_69, %c0_70, %c0_71] : memref<1x4x4x256xf32, #tpu.memory_space<vmem>>, vector<1x1x4x256xf32>
    %50 = vector.shape_cast %49 : vector<1x1x4x256xf32> to vector<4x256xf32>
    %51 = vector.shape_cast %39 : vector<4x256xf32> to vector<1x1x4x256xf32>
    tpu.vector_store %arg3[%c0_68, %c3_69, %c0_70, %c0_71], %51 {strides = array<i32>} : memref<1x4x4x256xf32, #tpu.memory_space<vmem>>, vector<1x1x4x256xf32>,
    return
  }
  func.func @transform_0(%arg0: i32) -> (i32, i32, i32, i32) {
    %c0_i32 = arith.constant 0 : i32
    %c0_i32_0 = arith.constant 0 : i32
    %c0_i32_1 = arith.constant 0 : i32
    %c0_i32_2 = arith.constant 0 : i32
    return %arg0, %c0_i32, %c0_i32_0, %c0_i32_1 : i32, i32, i32, i32
  }
  func.func @transform_1(%arg0: i32) -> (i32, i32, i32, i32) {
    %c0_i32 = arith.constant 0 : i32
    %c0_i32_0 = arith.constant 0 : i32
    %c0_i32_1 = arith.constant 0 : i32
    %c0_i32_2 = arith.constant 0 : i32
    %c0_i32_3 = arith.constant 0 : i32
    return %c0_i32, %c0_i32_0, %c0_i32_1, %c0_i32_2 : i32, i32, i32, i32
  }
  func.func @transform_2(%arg0: i32) -> (i32, i32, i32, i32) {
    %c0_i32 = arith.constant 0 : i32
    %c0_i32_0 = arith.constant 0 : i32
    %c0_i32_1 = arith.constant 0 : i32
    %c0_i32_2 = arith.constant 0 : i32
    return %arg0, %c0_i32, %c0_i32_0, %c0_i32_1 : i32, i32, i32, i32
  }
}

</mosaic_0001>

<llo_original>
// kernel: conv_transpose2d_pallas.1
$region0: #{conv_transpose2d_pallas.1}
  #allocation0 [shape = 'u32[]', space=smem, size = 0x4, offset = 0x4, fixed_abs, tag = 'smem constant byte address 0x4 - core index']
  #allocation1 [shape = 'u32[144,128]{1,0:T(1,128)}', space=vmem, size = 0x12000, scoped, tag = 'internal scratch']
  %s0 = inlined_call_operand.vmem [shape: f32[2,4,4,256], index: 0, kind: input, shape index: {}]
  %s1 = inlined_call_operand.vmem [shape: f32[3,3,4,4], index: 1, kind: input, shape index: {}]
  %s2 = inlined_call_operand.vmem [shape: f32[2,4,4,256], index: 2, kind: output, shape index: {}]
  %s3 = sld [smem:[#allocation0]]
  $region41: #{conv_transpose2d_pallas.1} parent=0
    _
  %s5 = ssub.s32 1, %s3
  %s6 = scalar_select 0, %s5, %s3
  loop: start=0, step=1, limit=4
  $region2: #{conv_transpose2d_pallas.1} parent=0 // loop_pre_header
    _
  $region3: #{conv_transpose2d_pallas.1} parent=0 // loop_header
    %s8 = sphi 0, %s12
    %p9 = scmp.ge.s32.totalorder %s8, 4
    %s18 = sphi 0, %s20
    %s21 = sphi 0, %s18
    %s22 = sphi 0, %s21
    %s38 = sphi 0, %s22
    %s42 = sphi 0, %s42
    %s44 = sphi 0, %s42
    %s45 = sphi 0, %s44
    %s59 = sphi 0, %s45
    %s65 = sphi 0, %s67
    %s68 = sphi 0, %s65
    %s69 = sphi 0, %s68
    %s85 = sphi 0, %s69
  $region4: #{conv_transpose2d_pallas.1} parent=0 // loop_header_branch
    %11 = sbr.rel (%p9) target = $region8
  $region5: #{conv_transpose2d_pallas.1} parent=0 // loop_body
    %s13 = ssub.s32 %s8, 1
    %s14 = ssub.s32 %s8, 2
    %s15 = sadd.s32 %s8, 1
    %s16 = ssub.s32 %s8, %s15
    %p17 = scmp.eq.s32.totalorder %s16, 0
    %s19 = sadd.s32 %s18, 1
    %s20 = scalar_select %p17, %s18, %s19
    %p23 = pneg %p17
    %p24 = scmp.eq.s32.totalorder %s8, 1
    %p25 = por %p23, %p24
    %p26 = scmp.ne.s32.totalorder %s18, %s21
    %p27 = scmp.eq.s32.totalorder %s8, 0
    %p28 = por %p26, %p27
    %p29 = scmp.ne.s32.totalorder %s18, %s21
    %p30 = scmp.eq.s32.totalorder %s13, 1
    %p31 = por %p29, %p30
    %p32 = scmp.ne.s32.totalorder %s21, %s22
    %p33 = scmp.eq.s32.totalorder %s13, 0
    %p34 = por %p32, %p33
    %p35 = scmp.ne.s32.totalorder %s21, %s22
    %p36 = scmp.eq.s32.totalorder %s14, 1
    %p37 = por %p35, %p36
    %p39 = scmp.ne.s32.totalorder %s22, %s38
    %p40 = scmp.eq.s32.totalorder %s14, 0
    %p41 = por %p39, %p40
    %s43 = sadd.s32 %s42, 1
    %p46 = scmp.eq.s32.totalorder %s8, 1
    %p47 = scmp.ne.s32.totalorder %s42, %s44
    %p48 = scmp.eq.s32.totalorder %s8, 0
    %p49 = por %p47, %p48
    %p50 = scmp.ne.s32.totalorder %s42, %s44
    %p51 = scmp.eq.s32.totalorder %s13, 1
    %p52 = por %p50, %p51
    %p53 = scmp.ne.s32.totalorder %s44, %s45
    %p54 = scmp.eq.s32.totalorder %s13, 0
    %p55 = por %p53, %p54
    %p56 = scmp.ne.s32.totalorder %s44, %s45
    %p57 = scmp.eq.s32.totalorder %s14, 1
    %p58 = por %p56, %p57
    %p60 = scmp.ne.s32.totalorder %s45, %s59
    %p61 = scmp.eq.s32.totalorder %s14, 0
    %p62 = por %p60, %p61
    %s63 = ssub.s32 %s8, %s15
    %p64 = scmp.eq.s32.totalorder %s63, 0
    %s66 = sadd.s32 %s65, 1
    %s67 = scalar_select %p64, %s65, %s66
    %p70 = pneg %p64
    %p71 = scmp.eq.s32.totalorder %s8, 1
    %p72 = por %p70, %p71
    %p73 = scmp.ne.s32.totalorder %s65, %s68
    %p74 = scmp.eq.s32.totalorder %s8, 0
    %p75 = por %p73, %p74
    %p76 = scmp.ne.s32.totalorder %s65, %s68
    %p77 = scmp.eq.s32.totalorder %s13, 1
    %p78 = por %p76, %p77
    %p79 = scmp.ne.s32.totalorder %s68, %s69
    %p80 = scmp.eq.s32.totalorder %s13, 0
    %p81 = por %p79, %p80
    %p82 = scmp.ne.s32.totalorder %s68, %s69
    %p83 = scmp.eq.s32.totalorder %s14, 1
    %p84 = por %p82, %p83
    %p86 = scmp.ne.s32.totalorder %s69, %s85
    %p87 = scmp.eq.s32.totalorder %s14, 0
    %p88 = por %p86, %p87
    %p89 = scmp.le.s32.totalorder 1, %s8
    %p90 = scmp.lt.s32.totalorder %s8, 3
    %p91 = pnand %p89, %p90
    %p92 = pneg %p91
    // Predicated region
    $region9: #{conv_transpose2d_pallas.1} parent=5 // pred_check
      _
    $region10: #{conv_transpose2d_pallas.1} parent=5 // pred_check_branch
      %94 = sbr.rel (%p91) target = $region12
    $region11: #{conv_transpose2d_pallas.1} parent=5 // pred_region
      %s95 = ssub.s32 %s8, 1
      // Predicated region
      $region13: #{conv_transpose2d_pallas.1} parent=11 // pred_check
        %p96 = pneg %p55
      $region14: #{conv_transpose2d_pallas.1} parent=11 // pred_check_branch
        %98 = sbr.rel (%p96) target = $region16
      $region15: #{conv_transpose2d_pallas.1} parent=11 // pred_region
        _
      $region16: #{conv_transpose2d_pallas.1} parent=11 // pred_fallthru
        _
    $region12: #{conv_transpose2d_pallas.1} parent=5 // pred_fallthru
      _
    %p99 = scmp.lt.s32.totalorder %s8, 2
    // Predicated region
    $region17: #{conv_transpose2d_pallas.1} parent=5 // pred_check
      %p100 = pneg %p99
    $region18: #{conv_transpose2d_pallas.1} parent=5 // pred_check_branch
      %102 = sbr.rel (%p100) target = $region20
    $region19: #{conv_transpose2d_pallas.1} parent=5 // pred_region
      // Predicated region
      $region21: #{conv_transpose2d_pallas.1} parent=19 // pred_check
        %p103 = pneg %p28
      $region22: #{conv_transpose2d_pallas.1} parent=19 // pred_check_branch
        %105 = sbr.rel (%p103) target = $region24
      $region23: #{conv_transpose2d_pallas.1} parent=19 // pred_region
        %p106 = scmp.lt.s32.totalorder %s8, 1
        %s107 = scalar_select %p106, %s8, 1
        %s108 = smul.addr %s107, 8
        %s109 = smul.addr %s108, 4
        %s110 = scalar_lea.vmem %s0, %s109
      $region24: #{conv_transpose2d_pallas.1} parent=19 // pred_fallthru
        _
    $region20: #{conv_transpose2d_pallas.1} parent=5 // pred_fallthru
      _
    %p111 = scmp.le.s32.totalorder 1, %s8
    %p112 = scmp.lt.s32.totalorder %s8, 3
    %p113 = pnand %p111, %p112
    %p114 = pneg %p113
    // Predicated region
    $region25: #{conv_transpose2d_pallas.1} parent=5 // pred_check
      _
    $region26: #{conv_transpose2d_pallas.1} parent=5 // pred_check_branch
      %116 = sbr.rel (%p113) target = $region28
    $region27: #{conv_transpose2d_pallas.1} parent=5 // pred_region
      %s117 = ssub.s32 %s8, 1
      %p118 = scmp.lt.s32.totalorder %s13, 1
      %s119 = scalar_select %p118, %s13, 1
      %s120 = smul.addr %s119, 8
      %s121 = smul.addr %s120, 4
      %s122 = scalar_lea.vmem %s0, %s121
      %p123 = pneg %p34
      %p124 = pneg %p31
      %p125 = pneg %p55
      %p126 = pneg %p52
      %p127 = pneg %p81
      %p128 = pneg %p78
      %p129 = scmp.lt.s32.totalorder %s13, 1
      %s130 = scalar_select %p129, %s13, 1
      %s131 = smul.addr %s130, 8
      %s132 = smul.addr %s131, 4
      %s133 = scalar_lea.vmem %s2, %s132
      %p134 = scmp.lt.s32.totalorder %s13, 1
      %s135 = scalar_select %p134, %s13, 1
      %s136 = smul.addr %s135, 8
      %s137 = smul.addr %s136, 4
      %s138 = scalar_lea.vmem %s0, %s137
      %p139 = scmp.lt.s32.totalorder %s13, 1
      %s140 = scalar_select %p139, %s13, 1
      %s141 = smul.addr %s140, 8
      %s142 = smul.addr %s141, 4
      %s143 = scalar_lea.vmem %s2, %s142
      %v144 = vld [vmem:[%s138] sm:$0xff]
      %s145 = scalar_lea.vmem %s138, 8
      %v146 = vld [vmem:[%s145] sm:$0xff]
      %s147 = scalar_lea.vmem %s138, 16
      %v148 = vld [vmem:[%s147] sm:$0xff]
      %s149 = scalar_lea.vmem %s138, 24
      %v150 = vld [vmem:[%s149] sm:$0xff]
      %s151 = scalar_lea.vmem %s1, 16
      %v152 = vld [vmem:[%s151] sm:$0xf]
      %v154 = vcombine.high %v144, %v144
      %vm155 = vcmask 31744
      %v157 = vsel %vm155, %v152, 0
      %vm159 = vcmask 1043456
      %v160 = vsel %vm159, %v144, 0
      %v162 = vsel %vm159, %v154, 0
      %164 = vmatprep.subr.mxu0 0.0
      %165 = vmatpush1.msra.mxu0 0.0
      %166 = vmatprep.subr.mxu0 0.0
      %167 = vmatpush1.msra.mxu0 0.0
      %168 = vmatprep.subr.mxu0 0.0
      %169 = vmatpush1.msra.mxu0 0.0
      %170 = vmatprep.subr.mxu0 0.0
      %171 = vmatpush1.msra.mxu0 0.0
      %172 = vmatprep.subr.mxu0 0.0
      %173 = vmatpush1.msra.mxu0 0.0
      %174 = vmatprep.subr.mxu0 0.0
      %175 = vmatpush1.msra.mxu0 0.0
      %176 = vmatprep.subr.mxu0 0.0
      %177 = vmatpush1.msra.mxu0 0.0
      %178 = vmatprep.subr.mxu0 0.0
      %179 = vmatpush1.msra.mxu0 0.0
      %180 = vmatprep.subr.mxu0 0.0
      %181 = vmatpush1.msra.mxu0 0.0
      %182 = vmatprep.subr.mxu0 0.0
      %183 = vmatpush1.msra.mxu0 0.0
      %184 = vmatprep.subr.mxu0 0.0
      %185 = vmatpush1.msra.mxu0 0.0
      %186 = vmatprep.subr.mxu0 0.0
      %187 = vmatpush1.msra.mxu0 0.0
      %188 = vmatprep.subr.mxu0 0.0
      %189 = vmatpush1.msra.mxu0 0.0
      %190 = vmatprep.subr.mxu0 0.0
      %191 = vmatpush1.msra.mxu0 0.0
      %192 = vmatprep.subr.mxu0 0.0
      %193 = vmatpush1.msra.mxu0 0.0
      %194 = vmatprep.subr.mxu0 %v162
      %195 = vmatpush1.msra.mxu0 %v160
      %196 = vmatprep.subr.mxu0 0.0
      %197 = vmatpush2.msra.mxu0 0.0
      %198 = vmatprep.subr.mxu0 0.0
      %199 = vmatpush2.msra.mxu0 0.0
      %200 = vmatprep.subr.mxu0 0.0
      %201 = vmatpush2.msra.mxu0 0.0
      %202 = vmatprep.subr.mxu0 0.0
      %203 = vmatpush2.msra.mxu0 0.0
      %204 = vmatprep.subr.mxu0 0.0
      %205 = vmatpush2.msra.mxu0 0.0
      %206 = vmatprep.subr.mxu0 0.0
      %207 = vmatpush2.msra.mxu0 0.0
      %208 = vmatprep.subr.mxu0 0.0
      %209 = vmatpush2.msra.mxu0 0.0
      %210 = vmatprep.subr.mxu0 0.0
      %211 = vmatpush2.msra.mxu0 0.0
      %212 = vmatprep.subr.mxu0 0.0
      %213 = vmatpush2.msra.mxu0 0.0
      %214 = vmatprep.subr.mxu0 0.0
      %215 = vmatpush2.msra.mxu0 0.0
      %216 = vmatprep.subr.mxu0 0.0
      %217 = vmatpush2.msra.mxu0 0.0
      %218 = vmatprep.subr.mxu0 0.0
      %219 = vmatpush2.msra.mxu0 0.0
      %220 = vmatprep.subr.mxu0 0.0
      %221 = vmatpush2.msra.mxu0 0.0
      %222 = vmatprep.subr.mxu0 0.0
      %223 = vmatpush2.msra.mxu0 0.0
      %224 = vmatprep.subr.mxu0 0.0
      %225 = vmatpush2.msra.mxu0 0.0
      %226 = vmatprep.subr.mxu0 0.0
      %227 = vmatpush2.msra.mxu0 0.0
      %228 = vmatprep.mubr.f32.mxu0 0.0
      %229 = vmatmul.mubr.f32.gmra.mxu0 %v157
      %v230 = vpop.f32.mrf.mxu0
      %v231 = vadd.f32 0.0, %v230
      %v232 = vpop.f32.mrf.mxu0
      %v233 = vadd.f32 0.0, %v232
      %234 = vdwg.mxu0
      %s235 = scalar_lea.vmem %s1, 20
      %v236 = vld [vmem:[%s235] sm:$0xf]
      %s237 = scalar_lea.vmem %s1, 12
      %v238 = vld [vmem:[%s237] sm:$0xf]
      %v240 = vcombine.high %v146, %v146
      %v242 = vsel %vm155, %v238, 0
      %v244 = vsel %vm159, %v146, 0
      %v246 = vsel %vm159, %v240, 0
      %248 = vmatprep.subr.mxu0 0.0
      %249 = vmatpush1.msra.mxu0 0.0
      %250 = vmatprep.subr.mxu0 0.0
      %251 = vmatpush1.msra.mxu0 0.0
      %252 = vmatprep.subr.mxu0 0.0
      %253 = vmatpush1.msra.mxu0 0.0
      %254 = vmatprep.subr.mxu0 0.0
      %255 = vmatpush1.msra.mxu0 0.0
      %256 = vmatprep.subr.mxu0 0.0
      %257 = vmatpush1.msra.mxu0 0.0
      %258 = vmatprep.subr.mxu0 0.0
      %259 = vmatpush1.msra.mxu0 0.0
      %260 = vmatprep.subr.mxu0 0.0
      %261 = vmatpush1.msra.mxu0 0.0
      %262 = vmatprep.subr.mxu0 0.0
      %263 = vmatpush1.msra.mxu0 0.0
      %264 = vmatprep.subr.mxu0 0.0
      %265 = vmatpush1.msra.mxu0 0.0
      %266 = vmatprep.subr.mxu0 0.0
      %267 = vmatpush1.msra.mxu0 0.0
      %268 = vmatprep.subr.mxu0 0.0
      %269 = vmatpush1.msra.mxu0 0.0
      %270 = vmatprep.subr.mxu0 0.0
      %271 = vmatpush1.msra.mxu0 0.0
      %272 = vmatprep.subr.mxu0 0.0
      %273 = vmatpush1.msra.mxu0 0.0
      %274 = vmatprep.subr.mxu0 0.0
      %275 = vmatpush1.msra.mxu0 0.0
      %276 = vmatprep.subr.mxu0 0.0
      %277 = vmatpush1.msra.mxu0 0.0
      %278 = vmatprep.subr.mxu0 %v246
      %279 = vmatpush1.msra.mxu0 %v244
      %280 = vmatprep.subr.mxu0 0.0
      %281 = vmatpush2.msra.mxu0 0.0
      %282 = vmatprep.subr.mxu0 0.0
      %283 = vmatpush2.msra.mxu0 0.0
      %284 = vmatprep.subr.mxu0 0.0
      %285 = vmatpush2.msra.mxu0 0.0
      %286 = vmatprep.subr.mxu0 0.0
      %287 = vmatpush2.msra.mxu0 0.0
      %288 = vmatprep.subr.mxu0 0.0
      %289 = vmatpush2.msra.mxu0 0.0
      %290 = vmatprep.subr.mxu0 0.0
      %291 = vmatpush2.msra.mxu0 0.0
      %292 = vmatprep.subr.mxu0 0.0
      %293 = vmatpush2.msra.mxu0 0.0
      %294 = vmatprep.subr.mxu0 0.0
      %295 = vmatpush2.msra.mxu0 0.0
      %296 = vmatprep.subr.mxu0 0.0
      %297 = vmatpush2.msra.mxu0 0.0
      %298 = vmatprep.subr.mxu0 0.0
      %299 = vmatpush2.msra.mxu0 0.0
      %300 = vmatprep.subr.mxu0 0.0
      %301 = vmatpush2.msra.mxu0 0.0
      %302 = vmatprep.subr.mxu0 0.0
      %303 = vmatpush2.msra.mxu0 0.0
      %304 = vmatprep.subr.mxu0 0.0
      %305 = vmatpush2.msra.mxu0 0.0
      %306 = vmatprep.subr.mxu0 0.0
      %307 = vmatpush2.msra.mxu0 0.0
      %308 = vmatprep.subr.mxu0 0.0
      %309 = vmatpush2.msra.mxu0 0.0
      %310 = vmatprep.subr.mxu0 0.0
      %311 = vmatpush2.msra.mxu0 0.0
      %312 = vmatprep.mubr.f32.mxu0 0.0
      %313 = vmatmul.mubr.f32.gmra.mxu0 %v242
      %v314 = vpop.f32.mrf.mxu0
      %v315 = vadd.f32 0.0, %v314
      %v316 = vpop.f32.mrf.mxu0
      %v317 = vadd.f32 0.0, %v316
      %318 = vdwg.mxu0
      %v320 = vsel %vm155, %v236, 0
      %322 = vmatprep.subr.mxu0 0.0
      %323 = vmatpush1.msra.mxu0 0.0
      %324 = vmatprep.subr.mxu0 0.0
      %325 = vmatpush1.msra.mxu0 0.0
      %326 = vmatprep.subr.mxu0 0.0
      %327 = vmatpush1.msra.mxu0 0.0
      %328 = vmatprep.subr.mxu0 0.0
      %329 = vmatpush1.msra.mxu0 0.0
      %330 = vmatprep.subr.mxu0 0.0
      %331 = vmatpush1.msra.mxu0 0.0
      %332 = vmatprep.subr.mxu0 0.0
      %333 = vmatpush1.msra.mxu0 0.0
      %334 = vmatprep.subr.mxu0 0.0
      %335 = vmatpush1.msra.mxu0 0.0
      %336 = vmatprep.subr.mxu0 0.0
      %337 = vmatpush1.msra.mxu0 0.0
      %338 = vmatprep.subr.mxu0 0.0
      %339 = vmatpush1.msra.mxu0 0.0
      %340 = vmatprep.subr.mxu0 0.0
      %341 = vmatpush1.msra.mxu0 0.0
      %342 = vmatprep.subr.mxu0 0.0
      %343 = vmatpush1.msra.mxu0 0.0
      %344 = vmatprep.subr.mxu0 0.0
      %345 = vmatpush1.msra.mxu0 0.0
      %346 = vmatprep.subr.mxu0 0.0
      %347 = vmatpush1.msra.mxu0 0.0
      %348 = vmatprep.subr.mxu0 0.0
      %349 = vmatpush1.msra.mxu0 0.0
      %350 = vmatprep.subr.mxu0 0.0
      %351 = vmatpush1.msra.mxu0 0.0
      %352 = vmatprep.subr.mxu0 %v162
      %353 = vmatpush1.msra.mxu0 %v160
      %354 = vmatprep.subr.mxu0 0.0
      %355 = vmatpush2.msra.mxu0 0.0
      %356 = vmatprep.subr.mxu0 0.0
      %357 = vmatpush2.msra.mxu0 0.0
      %358 = vmatprep.subr.mxu0 0.0
      %359 = vmatpush2.msra.mxu0 0.0
      %360 = vmatprep.subr.mxu0 0.0
      %361 = vmatpush2.msra.mxu0 0.0
      %362 = vmatprep.subr.mxu0 0.0
      %363 = vmatpush2.msra.mxu0 0.0
      %364 = vmatprep.subr.mxu0 0.0
      %365 = vmatpush2.msra.mxu0 0.0
      %366 = vmatprep.subr.mxu0 0.0
      %367 = vmatpush2.msra.mxu0 0.0
      %368 = vmatprep.subr.mxu0 0.0
      %369 = vmatpush2.msra.mxu0 0.0
      %370 = vmatprep.subr.mxu0 0.0
      %371 = vmatpush2.msra.mxu0 0.0
      %372 = vmatprep.subr.mxu0 0.0
      %373 = vmatpush2.msra.mxu0 0.0
      %374 = vmatprep.subr.mxu0 0.0
      %375 = vmatpush2.msra.mxu0 0.0
      %376 = vmatprep.subr.mxu0 0.0
      %377 = vmatpush2.msra.mxu0 0.0
      %378 = vmatprep.subr.mxu0 0.0
      %379 = vmatpush2.msra.mxu0 0.0
      %380 = vmatprep.subr.mxu0 0.0
      %381 = vmatpush2.msra.mxu0 0.0
      %382 = vmatprep.subr.mxu0 0.0
      %383 = vmatpush2.msra.mxu0 0.0
      %384 = vmatprep.subr.mxu0 0.0
      %385 = vmatpush2.msra.mxu0 0.0
      %386 = vmatprep.mubr.f32.mxu0 0.0
      %387 = vmatmul.mubr.f32.gmra.mxu0 %v320
      %v388 = vpop.f32.mrf.mxu0
      %v389 = vadd.f32 %v315, %v388
      %v390 = vpop.f32.mrf.mxu0
      %v391 = vadd.f32 %v317, %v390
      %392 = vdwg.mxu0
      %s393 = scalar_lea.vmem %s1, 28
      %v394 = vld [vmem:[%s393] sm:$0xf]
      %s395 = scalar_lea.vmem %s1, 4
      %v396 = vld [vmem:[%s395] sm:$0xf]
      %v398 = vcombine.high %v148, %v148
      %v400 = vsel %vm155, %v396, 0
      %v402 = vsel %vm159, %v148, 0
      %v404 = vsel %vm159, %v398, 0
      %406 = vmatprep.subr.mxu0 0.0
      %407 = vmatpush1.msra.mxu0 0.0
      %408 = vmatprep.subr.mxu0 0.0
      %409 = vmatpush1.msra.mxu0 0.0
      %410 = vmatprep.subr.mxu0 0.0
      %411 = vmatpush1.msra.mxu0 0.0
      %412 = vmatprep.subr.mxu0 0.0
      %413 = vmatpush1.msra.mxu0 0.0
      %414 = vmatprep.subr.mxu0 0.0
      %415 = vmatpush1.msra.mxu0 0.0
      %416 = vmatprep.subr.mxu0 0.0
      %417 = vmatpush1.msra.mxu0 0.0
      %418 = vmatprep.subr.mxu0 0.0
      %419 = vmatpush1.msra.mxu0 0.0
      %420 = vmatprep.subr.mxu0 0.0
      %421 = vmatpush1.msra.mxu0 0.0
      %422 = vmatprep.subr.mxu0 0.0
      %423 = vmatpush1.msra.mxu0 0.0
      %424 = vmatprep.subr.mxu0 0.0
      %425 = vmatpush1.msra.mxu0 0.0
      %426 = vmatprep.subr.mxu0 0.0
      %427 = vmatpush1.msra.mxu0 0.0
      %428 = vmatprep.subr.mxu0 0.0
      %429 = vmatpush1.msra.mxu0 0.0
      %430 = vmatprep.subr.mxu0 0.0
      %431 = vmatpush1.msra.mxu0 0.0
      %432 = vmatprep.subr.mxu0 0.0
      %433 = vmatpush1.msra.mxu0 0.0
      %434 = vmatprep.subr.mxu0 0.0
      %435 = vmatpush1.msra.mxu0 0.0
      %436 = vmatprep.subr.mxu0 %v404
      %437 = vmatpush1.msra.mxu0 %v402
      %438 = vmatprep.subr.mxu0 0.0
      %439 = vmatpush2.msra.mxu0 0.0
      %440 = vmatprep.subr.mxu0 0.0
      %441 = vmatpush2.msra.mxu0 0.0
      %442 = vmatprep.subr.mxu0 0.0
      %443 = vmatpush2.msra.mxu0 0.0
      %444 = vmatprep.subr.mxu0 0.0
      %445 = vmatpush2.msra.mxu0 0.0
      %446 = vmatprep.subr.mxu0 0.0
      %447 = vmatpush2.msra.mxu0 0.0
      %448 = vmatprep.subr.mxu0 0.0
      %449 = vmatpush2.msra.mxu0 0.0
      %450 = vmatprep.subr.mxu0 0.0
      %451 = vmatpush2.msra.mxu0 0.0
      %452 = vmatprep.subr.mxu0 0.0
      %453 = vmatpush2.msra.mxu0 0.0
      %454 = vmatprep.subr.mxu0 0.0
      %455 = vmatpush2.msra.mxu0 0.0
      %456 = vmatprep.subr.mxu0 0.0
      %457 = vmatpush2.msra.mxu0 0.0
      %458 = vmatprep.subr.mxu0 0.0
      %459 = vmatpush2.msra.mxu0 0.0
      %460 = vmatprep.subr.mxu0 0.0
      %461 = vmatpush2.msra.mxu0 0.0
      %462 = vmatprep.subr.mxu0 0.0
      %463 = vmatpush2.msra.mxu0 0.0
      %464 = vmatprep.subr.mxu0 0.0
      %465 = vmatpush2.msra.mxu0 0.0
      %466 = vmatprep.subr.mxu0 0.0
      %467 = vmatpush2.msra.mxu0 0.0
      %468 = vmatprep.subr.mxu0 0.0
      %469 = vmatpush2.msra.mxu0 0.0
      %470 = vmatprep.mubr.f32.mxu0 0.0
      %471 = vmatmul.mubr.f32.gmra.mxu0 %v400
      %v472 = vpop.f32.mrf.mxu0
      %v473 = vadd.f32 0.0, %v472
      %v474 = vpop.f32.mrf.mxu0
      %v475 = vadd.f32 0.0, %v474
      %476 = vdwg.mxu0
      %v478 = vsel %vm155, %v394, 0
      %480 = vmatprep.subr.mxu0 0.0
      %481 = vmatpush1.msra.mxu0 0.0
      %482 = vmatprep.subr.mxu0 0.0
      %483 = vmatpush1.msra.mxu0 0.0
      %484 = vmatprep.subr.mxu0 0.0
      %485 = vmatpush1.msra.mxu0 0.0
      %486 = vmatprep.subr.mxu0 0.0
      %487 = vmatpush1.msra.mxu0 0.0
      %488 = vmatprep.subr.mxu0 0.0
      %489 = vmatpush1.msra.mxu0 0.0
      %490 = vmatprep.subr.mxu0 0.0
      %491 = vmatpush1.msra.mxu0 0.0
      %492 = vmatprep.subr.mxu0 0.0
      %493 = vmatpush1.msra.mxu0 0.0
      %494 = vmatprep.subr.mxu0 0.0
      %495 = vmatpush1.msra.mxu0 0.0
      %496 = vmatprep.subr.mxu0 0.0
      %497 = vmatpush1.msra.mxu0 0.0
      %498 = vmatprep.subr.mxu0 0.0
      %499 = vmatpush1.msra.mxu0 0.0
      %500 = vmatprep.subr.mxu0 0.0
      %501 = vmatpush1.msra.mxu0 0.0
      %502 = vmatprep.subr.mxu0 0.0
      %503 = vmatpush1.msra.mxu0 0.0
      %504 = vmatprep.subr.mxu0 0.0
      %505 = vmatpush1.msra.mxu0 0.0
      %506 = vmatprep.subr.mxu0 0.0
      %507 = vmatpush1.msra.mxu0 0.0
      %508 = vmatprep.subr.mxu0 0.0
      %509 = vmatpush1.msra.mxu0 0.0
      %510 = vmatprep.subr.mxu0 %v162
      %511 = vmatpush1.msra.mxu0 %v160
      %512 = vmatprep.subr.mxu0 0.0
      %513 = vmatpush2.msra.mxu0 0.0
      %514 = vmatprep.subr.mxu0 0.0
      %515 = vmatpush2.msra.mxu0 0.0
      %516 = vmatprep.subr.mxu0 0.0
      %517 = vmatpush2.msra.mxu0 0.0
      %518 = vmatprep.subr.mxu0 0.0
      %519 = vmatpush2.msra.mxu0 0.0
      %520 = vmatprep.subr.mxu0 0.0
      %521 = vmatpush2.msra.mxu0 0.0
      %522 = vmatprep.subr.mxu0 0.0
      %523 = vmatpush2.msra.mxu0 0.0
      %524 = vmatprep.subr.mxu0 0.0
      %525 = vmatpush2.msra.mxu0 0.0
      %526 = vmatprep.subr.mxu0 0.0
      %527 = vmatpush2.msra.mxu0 0.0
      %528 = vmatprep.subr.mxu0 0.0
      %529 = vmatpush2.msra.mxu0 0.0
      %530 = vmatprep.subr.mxu0 0.0
      %531 = vmatpush2.msra.mxu0 0.0
      %532 = vmatprep.subr.mxu0 0.0
      %533 = vmatpush2.msra.mxu0 0.0
      %534 = vmatprep.subr.mxu0 0.0
      %535 = vmatpush2.msra.mxu0 0.0
      %536 = vmatprep.subr.mxu0 0.0
      %537 = vmatpush2.msra.mxu0 0.0
      %538 = vmatprep.subr.mxu0 0.0
      %539 = vmatpush2.msra.mxu0 0.0
      %540 = vmatprep.subr.mxu0 0.0
      %541 = vmatpush2.msra.mxu0 0.0
      %542 = vmatprep.subr.mxu0 0.0
      %543 = vmatpush2.msra.mxu0 0.0
      %544 = vmatprep.mubr.f32.mxu0 0.0
      %545 = vmatmul.mubr.f32.gmra.mxu0 %v478
      %v546 = vpop.f32.mrf.mxu0
      %v547 = vadd.f32 %v473, %v546
      %v548 = vpop.f32.mrf.mxu0
      %v549 = vadd.f32 %v475, %v548
      %550 = vdwg.mxu0
      %s551 = scalar_lea.vmem %s1, 32
      %v552 = vld [vmem:[%s551] sm:$0xf]
      %s553 = scalar_lea.vmem %s1, 24
      %v554 = vld [vmem:[%s553] sm:$0xf]
      %v556 = vsel %vm155, %v554, 0
      %558 = vmatprep.subr.mxu0 0.0
      %559 = vmatpush1.msra.mxu0 0.0
      %560 = vmatprep.subr.mxu0 0.0
      %561 = vmatpush1.msra.mxu0 0.0
      %562 = vmatprep.subr.mxu0 0.0
      %563 = vmatpush1.msra.mxu0 0.0
      %564 = vmatprep.subr.mxu0 0.0
      %565 = vmatpush1.msra.mxu0 0.0
      %566 = vmatprep.subr.mxu0 0.0
      %567 = vmatpush1.msra.mxu0 0.0
      %568 = vmatprep.subr.mxu0 0.0
      %569 = vmatpush1.msra.mxu0 0.0
      %570 = vmatprep.subr.mxu0 0.0
      %571 = vmatpush1.msra.mxu0 0.0
      %572 = vmatprep.subr.mxu0 0.0
      %573 = vmatpush1.msra.mxu0 0.0
      %574 = vmatprep.subr.mxu0 0.0
      %575 = vmatpush1.msra.mxu0 0.0
      %576 = vmatprep.subr.mxu0 0.0
      %577 = vmatpush1.msra.mxu0 0.0
      %578 = vmatprep.subr.mxu0 0.0
      %579 = vmatpush1.msra.mxu0 0.0
      %580 = vmatprep.subr.mxu0 0.0
      %581 = vmatpush1.msra.mxu0 0.0
      %582 = vmatprep.subr.mxu0 0.0
      %583 = vmatpush1.msra.mxu0 0.0
      %584 = vmatprep.subr.mxu0 0.0
      %585 = vmatpush1.msra.mxu0 0.0
      %586 = vmatprep.subr.mxu0 0.0
      %587 = vmatpush1.msra.mxu0 0.0
      %588 = vmatprep.subr.mxu0 %v246
      %589 = vmatpush1.msra.mxu0 %v244
      %590 = vmatprep.subr.mxu0 0.0
      %591 = vmatpush2.msra.mxu0 0.0
      %592 = vmatprep.subr.mxu0 0.0
      %593 = vmatpush2.msra.mxu0 0.0
      %594 = vmatprep.subr.mxu0 0.0
      %595 = vmatpush2.msra.mxu0 0.0
      %596 = vmatprep.subr.mxu0 0.0
      %597 = vmatpush2.msra.mxu0 0.0
      %598 = vmatprep.subr.mxu0 0.0
      %599 = vmatpush2.msra.mxu0 0.0
      %600 = vmatprep.subr.mxu0 0.0
      %601 = vmatpush2.msra.mxu0 0.0
      %602 = vmatprep.subr.mxu0 0.0
      %603 = vmatpush2.msra.mxu0 0.0
      %604 = vmatprep.subr.mxu0 0.0
      %605 = vmatpush2.msra.mxu0 0.0
      %606 = vmatprep.subr.mxu0 0.0
      %607 = vmatpush2.msra.mxu0 0.0
      %608 = vmatprep.subr.mxu0 0.0
      %609 = vmatpush2.msra.mxu0 0.0
      %610 = vmatprep.subr.mxu0 0.0
      %611 = vmatpush2.msra.mxu0 0.0
      %612 = vmatprep.subr.mxu0 0.0
      %613 = vmatpush2.msra.mxu0 0.0
      %614 = vmatprep.subr.mxu0 0.0
      %615 = vmatpush2.msra.mxu0 0.0
      %616 = vmatprep.subr.mxu0 0.0
      %617 = vmatpush2.msra.mxu0 0.0
      %618 = vmatprep.subr.mxu0 0.0
      %619 = vmatpush2.msra.mxu0 0.0
      %620 = vmatprep.subr.mxu0 0.0
      %621 = vmatpush2.msra.mxu0 0.0
      %622 = vmatprep.mubr.f32.mxu0 0.0
      %623 = vmatmul.mubr.f32.gmra.mxu0 %v556
      %v624 = vpop.f32.mrf.mxu0
      %v625 = vadd.f32 0.0, %v624
      %v626 = vpop.f32.mrf.mxu0
      %v627 = vadd.f32 0.0, %v626
      %628 = vdwg.mxu0
      %v630 = vsel %vm155, %v552, 0
      %632 = vmatprep.subr.mxu0 0.0
      %633 = vmatpush1.msra.mxu0 0.0
      %634 = vmatprep.subr.mxu0 0.0
      %635 = vmatpush1.msra.mxu0 0.0
      %636 = vmatprep.subr.mxu0 0.0
      %637 = vmatpush1.msra.mxu0 0.0
      %638 = vmatprep.subr.mxu0 0.0
      %639 = vmatpush1.msra.mxu0 0.0
      %640 = vmatprep.subr.mxu0 0.0
      %641 = vmatpush1.msra.mxu0 0.0
      %642 = vmatprep.subr.mxu0 0.0
      %643 = vmatpush1.msra.mxu0 0.0
      %644 = vmatprep.subr.mxu0 0.0
      %645 = vmatpush1.msra.mxu0 0.0
      %646 = vmatprep.subr.mxu0 0.0
      %647 = vmatpush1.msra.mxu0 0.0
      %648 = vmatprep.subr.mxu0 0.0
      %649 = vmatpush1.msra.mxu0 0.0
      %650 = vmatprep.subr.mxu0 0.0
      %651 = vmatpush1.msra.mxu0 0.0
      %652 = vmatprep.subr.mxu0 0.0
      %653 = vmatpush1.msra.mxu0 0.0
      %654 = vmatprep.subr.mxu0 0.0
      %655 = vmatpush1.msra.mxu0 0.0
      %656 = vmatprep.subr.mxu0 0.0
      %657 = vmatpush1.msra.mxu0 0.0
      %658 = vmatprep.subr.mxu0 0.0
      %659 = vmatpush1.msra.mxu0 0.0
      %660 = vmatprep.subr.mxu0 0.0
      %661 = vmatpush1.msra.mxu0 0.0
      %662 = vmatprep.subr.mxu0 %v162
      %663 = vmatpush1.msra.mxu0 %v160
      %664 = vmatprep.subr.mxu0 0.0
      %665 = vmatpush2.msra.mxu0 0.0
      %666 = vmatprep.subr.mxu0 0.0
      %667 = vmatpush2.msra.mxu0 0.0
      %668 = vmatprep.subr.mxu0 0.0
      %669 = vmatpush2.msra.mxu0 0.0
      %670 = vmatprep.subr.mxu0 0.0
      %671 = vmatpush2.msra.mxu0 0.0
      %672 = vmatprep.subr.mxu0 0.0
      %673 = vmatpush2.msra.mxu0 0.0
      %674 = vmatprep.subr.mxu0 0.0
      %675 = vmatpush2.msra.mxu0 0.0
      %676 = vmatprep.subr.mxu0 0.0
      %677 = vmatpush2.msra.mxu0 0.0
      %678 = vmatprep.subr.mxu0 0.0
      %679 = vmatpush2.msra.mxu0 0.0
      %680 = vmatprep.subr.mxu0 0.0
      %681 = vmatpush2.msra.mxu0 0.0
      %682 = vmatprep.subr.mxu0 0.0
      %683 = vmatpush2.msra.mxu0 0.0
      %684 = vmatprep.subr.mxu0 0.0
      %685 = vmatpush2.msra.mxu0 0.0
      %686 = vmatprep.subr.mxu0 0.0
      %687 = vmatpush2.msra.mxu0 0.0
      %688 = vmatprep.subr.mxu0 0.0
      %689 = vmatpush2.msra.mxu0 0.0
      %690 = vmatprep.subr.mxu0 0.0
      %691 = vmatpush2.msra.mxu0 0.0
      %692 = vmatprep.subr.mxu0 0.0
      %693 = vmatpush2.msra.mxu0 0.0
      %694 = vmatprep.subr.mxu0 0.0
      %695 = vmatpush2.msra.mxu0 0.0
      %696 = vmatprep.mubr.f32.mxu0 0.0
      %697 = vmatmul.mubr.f32.gmra.mxu0 %v630
      %v698 = vpop.f32.mrf.mxu0
      %v699 = vadd.f32 %v625, %v698
      %v700 = vpop.f32.mrf.mxu0
      %v701 = vadd.f32 %v627, %v700
      %702 = vdwg.mxu0
      %s703 = scalar_lea.vmem %s1, 8
      %v704 = vld [vmem:[%s703] sm:$0xf]
      %v706 = vsel %vm155, %v704, 0
      %708 = vmatprep.subr.mxu0 0.0
      %709 = vmatpush1.msra.mxu0 0.0
      %710 = vmatprep.subr.mxu0 0.0
      %711 = vmatpush1.msra.mxu0 0.0
      %712 = vmatprep.subr.mxu0 0.0
      %713 = vmatpush1.msra.mxu0 0.0
      %714 = vmatprep.subr.mxu0 0.0
      %715 = vmatpush1.msra.mxu0 0.0
      %716 = vmatprep.subr.mxu0 0.0
      %717 = vmatpush1.msra.mxu0 0.0
      %718 = vmatprep.subr.mxu0 0.0
      %719 = vmatpush1.msra.mxu0 0.0
      %720 = vmatprep.subr.mxu0 0.0
      %721 = vmatpush1.msra.mxu0 0.0
      %722 = vmatprep.subr.mxu0 0.0
      %723 = vmatpush1.msra.mxu0 0.0
      %724 = vmatprep.subr.mxu0 0.0
      %725 = vmatpush1.msra.mxu0 0.0
      %726 = vmatprep.subr.mxu0 0.0
      %727 = vmatpush1.msra.mxu0 0.0
      %728 = vmatprep.subr.mxu0 0.0
      %729 = vmatpush1.msra.mxu0 0.0
      %730 = vmatprep.subr.mxu0 0.0
      %731 = vmatpush1.msra.mxu0 0.0
      %732 = vmatprep.subr.mxu0 0.0
      %733 = vmatpush1.msra.mxu0 0.0
      %734 = vmatprep.subr.mxu0 0.0
      %735 = vmatpush1.msra.mxu0 0.0
      %736 = vmatprep.subr.mxu0 0.0
      %737 = vmatpush1.msra.mxu0 0.0
      %738 = vmatprep.subr.mxu0 %v404
      %739 = vmatpush1.msra.mxu0 %v402
      %740 = vmatprep.subr.mxu0 0.0
      %741 = vmatpush2.msra.mxu0 0.0
      %742 = vmatprep.subr.mxu0 0.0
      %743 = vmatpush2.msra.mxu0 0.0
      %744 = vmatprep.subr.mxu0 0.0
      %745 = vmatpush2.msra.mxu0 0.0
      %746 = vmatprep.subr.mxu0 0.0
      %747 = vmatpush2.msra.mxu0 0.0
      %748 = vmatprep.subr.mxu0 0.0
      %749 = vmatpush2.msra.mxu0 0.0
      %750 = vmatprep.subr.mxu0 0.0
      %751 = vmatpush2.msra.mxu0 0.0
      %752 = vmatprep.subr.mxu0 0.0
      %753 = vmatpush2.msra.mxu0 0.0
      %754 = vmatprep.subr.mxu0 0.0
      %755 = vmatpush2.msra.mxu0 0.0
      %756 = vmatprep.subr.mxu0 0.0
      %757 = vmatpush2.msra.mxu0 0.0
      %758 = vmatprep.subr.mxu0 0.0
      %759 = vmatpush2.msra.mxu0 0.0
      %760 = vmatprep.subr.mxu0 0.0
      %761 = vmatpush2.msra.mxu0 0.0
      %762 = vmatprep.subr.mxu0 0.0
      %763 = vmatpush2.msra.mxu0 0.0
      %764 = vmatprep.subr.mxu0 0.0
      %765 = vmatpush2.msra.mxu0 0.0
      %766 = vmatprep.subr.mxu0 0.0
      %767 = vmatpush2.msra.mxu0 0.0
      %768 = vmatprep.subr.mxu0 0.0
      %769 = vmatpush2.msra.mxu0 0.0
      %770 = vmatprep.subr.mxu0 0.0
      %771 = vmatpush2.msra.mxu0 0.0
      %772 = vmatprep.mubr.f32.mxu0 0.0
      %773 = vmatmul.mubr.f32.gmra.mxu0 %v706
      %v774 = vpop.f32.mrf.mxu0
      %v775 = vadd.f32 0.0, %v774
      %v776 = vpop.f32.mrf.mxu0
      %v777 = vadd.f32 0.0, %v776
      %778 = vdwg.mxu0
      %v779 = vadd.f32 %v699, %v775
      %v780 = vadd.f32 %v701, %v777
      %v781 = vld [vmem:[%s1] sm:$0xf]
      %v783 = vcombine.high %v150, %v150
      %v785 = vsel %vm155, %v781, 0
      %v787 = vsel %vm159, %v150, 0
      %v789 = vsel %vm159, %v783, 0
      %791 = vmatprep.subr.mxu0 0.0
      %792 = vmatpush1.msra.mxu0 0.0
      %793 = vmatprep.subr.mxu0 0.0
      %794 = vmatpush1.msra.mxu0 0.0
      %795 = vmatprep.subr.mxu0 0.0
      %796 = vmatpush1.msra.mxu0 0.0
      %797 = vmatprep.subr.mxu0 0.0
      %798 = vmatpush1.msra.mxu0 0.0
      %799 = vmatprep.subr.mxu0 0.0
      %800 = vmatpush1.msra.mxu0 0.0
      %801 = vmatprep.subr.mxu0 0.0
      %802 = vmatpush1.msra.mxu0 0.0
      %803 = vmatprep.subr.mxu0 0.0
      %804 = vmatpush1.msra.mxu0 0.0
      %805 = vmatprep.subr.mxu0 0.0
      %806 = vmatpush1.msra.mxu0 0.0
      %807 = vmatprep.subr.mxu0 0.0
      %808 = vmatpush1.msra.mxu0 0.0
      %809 = vmatprep.subr.mxu0 0.0
      %810 = vmatpush1.msra.mxu0 0.0
      %811 = vmatprep.subr.mxu0 0.0
      %812 = vmatpush1.msra.mxu0 0.0
      %813 = vmatprep.subr.mxu0 0.0
      %814 = vmatpush1.msra.mxu0 0.0
      %815 = vmatprep.subr.mxu0 0.0
      %816 = vmatpush1.msra.mxu0 0.0
      %817 = vmatprep.subr.mxu0 0.0
      %818 = vmatpush1.msra.mxu0 0.0
      %819 = vmatprep.subr.mxu0 0.0
      %820 = vmatpush1.msra.mxu0 0.0
      %821 = vmatprep.subr.mxu0 %v789
      %822 = vmatpush1.msra.mxu0 %v787
      %823 = vmatprep.subr.mxu0 0.0
      %824 = vmatpush2.msra.mxu0 0.0
      %825 = vmatprep.subr.mxu0 0.0
      %826 = vmatpush2.msra.mxu0 0.0
      %827 = vmatprep.subr.mxu0 0.0
      %828 = vmatpush2.msra.mxu0 0.0
      %829 = vmatprep.subr.mxu0 0.0
      %830 = vmatpush2.msra.mxu0 0.0
      %831 = vmatprep.subr.mxu0 0.0
      %832 = vmatpush2.msra.mxu0 0.0
      %833 = vmatprep.subr.mxu0 0.0
      %834 = vmatpush2.msra.mxu0 0.0
      %835 = vmatprep.subr.mxu0 0.0
      %836 = vmatpush2.msra.mxu0 0.0
      %837 = vmatprep.subr.mxu0 0.0
      %838 = vmatpush2.msra.mxu0 0.0
      %839 = vmatprep.subr.mxu0 0.0
      %840 = vmatpush2.msra.mxu0 0.0
      %841 = vmatprep.subr.mxu0 0.0
      %842 = vmatpush2.msra.mxu0 0.0
      %843 = vmatprep.subr.mxu0 0.0
      %844 = vmatpush2.msra.mxu0 0.0
      %845 = vmatprep.subr.mxu0 0.0
      %846 = vmatpush2.msra.mxu0 0.0
      %847 = vmatprep.subr.mxu0 0.0
      %848 = vmatpush2.msra.mxu0 0.0
      %849 = vmatprep.subr.mxu0 0.0
      %850 = vmatpush2.msra.mxu0 0.0
      %851 = vmatprep.subr.mxu0 0.0
      %852 = vmatpush2.msra.mxu0 0.0
      %853 = vmatprep.subr.mxu0 0.0
      %854 = vmatpush2.msra.mxu0 0.0
      %855 = vmatprep.mubr.f32.mxu0 0.0
      %856 = vmatmul.mubr.f32.gmra.mxu0 %v785
      %v857 = vpop.f32.mrf.mxu0
      %v858 = vadd.f32 0.0, %v857
      %v859 = vpop.f32.mrf.mxu0
      %v860 = vadd.f32 0.0, %v859
      %861 = vdwg.mxu0
      %v862 = vadd.f32 %v779, %v858
      %v863 = vadd.f32 %v780, %v860
      %v866 = vcombine.low %v231, %v233
      %868 = vst [vmem:[%s143] sm:$0xff] %v866
      %v871 = vcombine.low %v389, %v391
      %s873 = scalar_lea.vmem %s143, 8
      %874 = vst [vmem:[%s873] sm:$0xff] %v871
      %v877 = vcombine.low %v547, %v549
      %s879 = scalar_lea.vmem %s143, 16
      %880 = vst [vmem:[%s879] sm:$0xff] %v877
      %v883 = vcombine.low %v862, %v863
      %s885 = scalar_lea.vmem %s143, 24
      %886 = vst [vmem:[%s885] sm:$0xff] %v883
      %p887 = scmp.lt.s32.totalorder %s13, 1
      %s888 = scalar_select %p887, %s13, 1
      %s889 = smul.addr %s888, 8
      %s890 = smul.addr %s889, 4
      %s891 = scalar_lea.vmem %s2, %s890
      // Predicated region
      $region29: #{conv_transpose2d_pallas.1} parent=27 // pred_check
        %p892 = pneg %p78
      $region30: #{conv_transpose2d_pallas.1} parent=27 // pred_check_branch
        %894 = sbr.rel (%p892) target = $region32
      $region31: #{conv_transpose2d_pallas.1} parent=27 // pred_region
        _
      $region32: #{conv_transpose2d_pallas.1} parent=27 // pred_fallthru
        _
    $region28: #{conv_transpose2d_pallas.1} parent=5 // pred_fallthru
      _
    %p895 = scmp.le.s32.totalorder 2, %s8
    // Predicated region
    $region33: #{conv_transpose2d_pallas.1} parent=5 // pred_check
      %p896 = pneg %p895
    $region34: #{conv_transpose2d_pallas.1} parent=5 // pred_check_branch
      %898 = sbr.rel (%p896) target = $region36
    $region35: #{conv_transpose2d_pallas.1} parent=5 // pred_region
      %s899 = ssub.s32 %s8, 2
      // Predicated region
      $region37: #{conv_transpose2d_pallas.1} parent=35 // pred_check
        %p900 = pneg %p84
      $region38: #{conv_transpose2d_pallas.1} parent=35 // pred_check_branch
        %902 = sbr.rel (%p900) target = $region40
      $region39: #{conv_transpose2d_pallas.1} parent=35 // pred_region
        %p903 = scmp.lt.s32.totalorder %s14, 1
        %s904 = scalar_select %p903, %s14, 1
        %s905 = smul.addr %s904, 8
        %s906 = smul.addr %s905, 4
        %s907 = scalar_lea.vmem %s2, %s906
      $region40: #{conv_transpose2d_pallas.1} parent=35 // pred_fallthru
        _
    $region36: #{conv_transpose2d_pallas.1} parent=5 // pred_fallthru
      _
  $region6: #{conv_transpose2d_pallas.1} parent=0 // loop_footer
    %s12 = sadd.s32 1, %s8
  $region7: #{conv_transpose2d_pallas.1} parent=0 // loop_footer_branch
    %7 = sbr.rel target = $region3
  $region8: #{conv_transpose2d_pallas.1} parent=0 // loop_exit
    _

</llo_original>
